<compile_context>
chip_gen: v7x
topology: tpu7x:2x2x1
jax: 0.10.0
libtpu: 0.0.40
codegen_flags: <defaults>
</compile_context>

<pallas_src>
import jax
import jax.numpy as jnp
from jax import lax
from jax.experimental import pallas as pl
from jax.experimental.pallas import tpu as pltpu


def _round_up(x, m):
    return (x + m - 1) // m * m


def _fold_bn_into_linear(w, b, gamma, beta, mean, var, eps):
    """PyTorch Linear (W is (out,in)): y = x @ W^T + b, followed by eval-mode
    BatchNorm1d, folds to a single affine map:
        y' = x @ (s[:,None] * W)^T + ((b - mean) * s + beta),
        s  = gamma / sqrt(var + eps)
    """
    s = gamma * lax.rsqrt(var + eps)
    return w * s[:, None], (b - mean) * s + beta


def _mlp_kernel(x_ref, w1_ref, b1_ref, w2_ref, b2_ref,
                w3_ref, b3_ref, w4_ref, b4_ref, o_ref):
    # x_ref: (block_b, d_in) batch tile.  Weights are (out, in) bf16, biases
    # (out, 1) f32, all full-extent grid-invariant resident blocks.
    # o_ref: (3, block_b) softmax probabilities (lane-dense last dim).
    xb = x_ref[...].astype(jnp.bfloat16)
    # h1^T = W1 @ x^T  : contract last dims of both operands (no transpose).
    h = lax.dot_general(w1_ref[...], xb, (((1,), (1,)), ((), ())),
                        preferred_element_type=jnp.float32) + b1_ref[...]
    h = jnp.maximum(h, 0.0).astype(jnp.bfloat16)        # (256, block_b)
    h = jnp.dot(w2_ref[...], h,
                preferred_element_type=jnp.float32) + b2_ref[...]
    h = jnp.maximum(h, 0.0).astype(jnp.bfloat16)        # (64, block_b)
    h = jnp.dot(w3_ref[...], h,
                preferred_element_type=jnp.float32) + b3_ref[...]
    h = jnp.maximum(h, 0.0).astype(jnp.bfloat16)        # (16, block_b)
    logits = jnp.dot(w4_ref[...], h,
                     preferred_element_type=jnp.float32) + b4_ref[...]
    # Numerically stable softmax over the class (sublane) axis.
    z = logits - jnp.max(logits, axis=0, keepdims=True)
    e = jnp.exp(z)
    inv = pl.reciprocal(jnp.sum(e, axis=0, keepdims=True), approx=True)
    o_ref[...] = (e * inv).astype(o_ref.dtype)


def fully_connected_net_forward(x, linear_params, bn_params, *, eps=1e-5,
                                block_b_max=4096):
    """Pallas forward of FullyConnectedNet (eval-mode BatchNorm).

    x:             (B, 8*hidden_dim), float32 or bfloat16
    linear_params: [(W1,b1),...,(W4,b4)] with W in PyTorch layout (out, in)
    bn_params:     [(gamma, beta, running_mean, running_var)] for the 3 BNs
    returns:       (B, 3) softmax probabilities, float32
    """
    B, d_in = x.shape

    # Fold the 3 eval-mode BatchNorms into their preceding Linear layers.
    folded = [_fold_bn_into_linear(*linear_params[i], *bn_params[i], eps)
              for i in range(3)]
    folded.append(linear_params[3])
    ws = [w.astype(jnp.bfloat16) for (w, _) in folded]
    bs = [b.reshape(-1, 1).astype(jnp.float32) for (_, b) in folded]
    w1, w2, w3, w4 = ws
    b1, b2, b3, b4 = bs
    out_dim = w4.shape[0]

    # Batch tiling.  Single exact tile for small B; otherwise tiles are a
    # multiple of 128 (lane-dense output / sublane-aligned input) with >=2
    # tiles so v7x's two TensorCores both get work.  No jnp.pad of x: the
    # ragged last tile is clipped by Pallas on both read and writeback.
    if B <= 256:
        block_b = B
    else:
        block_b = min(block_b_max, _round_up(pl.cdiv(B, 2), 128))
    grid_b = pl.cdiv(B, block_b)

    def full_spec(arr):
        # Grid-invariant, fully-resident block (weights / biases).
        return pl.BlockSpec(arr.shape, lambda i: (0, 0))

    d1, d2, d3 = w1.shape[0], w2.shape[0], w3.shape[0]
    flops = int(2 * B * (d_in * d1 + d1 * d2 + d2 * d3 + d3 * out_dim))
    bytes_accessed = int(x.size * x.dtype.itemsize + 4 * B * out_dim
                         + sum(int(a.size * a.dtype.itemsize)
                               for a in (w1, b1, w2, b2, w3, b3, w4, b4)))

    out_t = pl.pallas_call(
        _mlp_kernel,
        out_shape=jax.ShapeDtypeStruct((out_dim, B), jnp.float32),
        grid=(grid_b,),
        in_specs=[
            pl.BlockSpec((block_b, d_in), lambda i: (i, 0)),
            full_spec(w1), full_spec(b1),
            full_spec(w2), full_spec(b2),
            full_spec(w3), full_spec(b3),
            full_spec(w4), full_spec(b4),
        ],
        out_specs=pl.BlockSpec((out_dim, block_b), lambda i: (0, i)),
        compiler_params=pltpu.CompilerParams(
            dimension_semantics=("parallel",),
            vmem_limit_bytes=48 * 1024 * 1024),
        cost_estimate=pl.CostEstimate(
            flops=flops,
            transcendentals=int(B * (out_dim + 1)),
            bytes_accessed=bytes_accessed),
    )(x, w1, b1, w2, b2, w3, b3, w4, b4)
    # Transpose the small (3, B) lane-dense result back to module layout.
    return out_t.T


if __name__ == "__main__":
    key = jax.random.PRNGKey(0)
    keys = iter(jax.random.split(key, 32))

    hidden_dim = 16                 # -> in_features = 8 * 16 = 128 (lane-dense)
    B = 8
    dims = [8 * hidden_dim, 256, 64, 16, 3]
    eps = 1e-5

    x = jax.random.normal(next(keys), (B, dims[0]), dtype=jnp.float32)

    # PyTorch layout: W is (out_features, in_features).
    linear_params = []
    for i in range(4):
        fi, fo = dims[i], dims[i + 1]
        w = jax.random.normal(next(keys), (fo, fi), jnp.float32) / jnp.sqrt(fi)
        b = 0.1 * jax.random.normal(next(keys), (fo,), jnp.float32)
        linear_params.append((w, b))

    bn_params = []
    for i in range(3):
        fo = dims[i + 1]
        gamma = 1.0 + 0.1 * jax.random.normal(next(keys), (fo,), jnp.float32)
        beta = 0.1 * jax.random.normal(next(keys), (fo,), jnp.float32)
        mean = 0.1 * jax.random.normal(next(keys), (fo,), jnp.float32)
        var = 0.5 + jax.random.uniform(next(keys), (fo,), jnp.float32)
        bn_params.append((gamma, beta, mean, var))

    out = fully_connected_net_forward(x, linear_params, bn_params, eps=eps)
    out = jax.block_until_ready(out)

    # Plain-JAX f32 reference of the PyTorch module (eval-mode BN, NOT folded).
    h = x
    for i in range(3):
        w, b = linear_params[i]
        g, be, m, v = bn_params[i]
        h = h @ w.T + b
        h = (h - m) * (g / jnp.sqrt(v + eps)) + be
        h = jnp.maximum(h, 0.0)
    w4, b4 = linear_params[3]
    ref = jax.nn.softmax(h @ w4.T + b4, axis=-1)

    assert out.shape == (B, 3)
    # bf16 matmuls + approx reciprocal -> looser tolerance than pure f32.
    max_err = float(jnp.max(jnp.abs(out - ref)))
    assert max_err < 2.5e-2, f"max abs err = {max_err}"
    assert bool(jnp.allclose(jnp.sum(out, axis=-1), 1.0, atol=5e-3))

    print("KERNEL_OK")
</pallas_src>

<mosaic_0001>
module attributes {stable_mosaic.version = 11 : i64} {
  func.func @_mlp_kernel(%arg0: i32, %arg1: memref<8x128xf32, #tpu.memory_space<vmem>>, %arg2: memref<256x128xbf16, #tpu.memory_space<vmem>>, %arg3: memref<256x1xf32, #tpu.memory_space<vmem>>, %arg4: memref<64x256xbf16, #tpu.memory_space<vmem>>, %arg5: memref<64x1xf32, #tpu.memory_space<vmem>>, %arg6: memref<16x64xbf16, #tpu.memory_space<vmem>>, %arg7: memref<16x1xf32, #tpu.memory_space<vmem>>, %arg8: memref<3x16xbf16, #tpu.memory_space<vmem>>, %arg9: memref<3x1xf32, #tpu.memory_space<vmem>>, %arg10: memref<3x8xf32, #tpu.memory_space<vmem>>) attributes {dimension_semantics = [#tpu.dimension_semantics<parallel>], iteration_bounds = array<i64: 1>, scalar_prefetch = 0 : i64, scratch_operands = 0 : i64, tpu.core_type = #tpu.core_type<tc>, window_params = [{transform_indices = @transform_0, window_bounds = array<i64: 8, 128>}, {pipeline_mode = #tpu.pipeline_mode<synchronous>, transform_indices = @transform_1, window_bounds = array<i64: 256, 128>}, {pipeline_mode = #tpu.pipeline_mode<synchronous>, transform_indices = @transform_2, window_bounds = array<i64: 256, 1>}, {pipeline_mode = #tpu.pipeline_mode<synchronous>, transform_indices = @transform_3, window_bounds = array<i64: 64, 256>}, {pipeline_mode = #tpu.pipeline_mode<synchronous>, transform_indices = @transform_4, window_bounds = array<i64: 64, 1>}, {pipeline_mode = #tpu.pipeline_mode<synchronous>, transform_indices = @transform_5, window_bounds = array<i64: 16, 64>}, {pipeline_mode = #tpu.pipeline_mode<synchronous>, transform_indices = @transform_6, window_bounds = array<i64: 16, 1>}, {pipeline_mode = #tpu.pipeline_mode<synchronous>, transform_indices = @transform_7, window_bounds = array<i64: 3, 16>}, {pipeline_mode = #tpu.pipeline_mode<synchronous>, transform_indices = @transform_8, window_bounds = array<i64: 3, 1>}, {transform_indices = @transform_9, window_bounds = array<i64: 3, 8>}]} {
    %c0 = arith.constant 0 : index
    %c0_0 = arith.constant 0 : index
    %0 = vector.load %arg1[%c0, %c0_0] : memref<8x128xf32, #tpu.memory_space<vmem>>, vector<8x128xf32>
    %1 = arith.truncf %0 : vector<8x128xf32> to vector<8x128xbf16>
    %c0_1 = arith.constant 0 : index
    %c0_2 = arith.constant 0 : index
    %2 = vector.load %arg2[%c0_1, %c0_2] : memref<256x128xbf16, #tpu.memory_space<vmem>>, vector<256x128xbf16>
    %cst = arith.constant dense<0.000000e+00> : vector<256x8xf32>
    %3 = tpu.matmul %2, %1, %cst {dimension_numbers = #tpu.dot_dimension_numbers<[1], [1], [0], [0], [0, 0, 1, 0], [], []>} : vector<256x128xbf16>, vector<8x128xbf16>, vector<256x8xf32> -> vector<256x8xf32>
    %c0_3 = arith.constant 0 : index
    %c0_4 = arith.constant 0 : index
    %4 = vector.load %arg3[%c0_3, %c0_4] : memref<256x1xf32, #tpu.memory_space<vmem>>, vector<256x1xf32>
    %5 = vector.broadcast %4 : vector<256x1xf32> to vector<256x8xf32>
    %6 = arith.addf %3, %5 : vector<256x8xf32>
    %cst_5 = arith.constant 0.000000e+00 : f32
    %7 = vector.broadcast %cst_5 : f32 to vector<256x8xf32>
    %8 = arith.maximumf %6, %7 : vector<256x8xf32>
    %9 = arith.truncf %8 : vector<256x8xf32> to vector<256x8xbf16>
    %c0_6 = arith.constant 0 : index
    %c0_7 = arith.constant 0 : index
    %10 = vector.load %arg4[%c0_6, %c0_7] : memref<64x256xbf16, #tpu.memory_space<vmem>>, vector<64x256xbf16>
    %cst_8 = arith.constant dense<0.000000e+00> : vector<64x8xf32>
    %11 = tpu.matmul %10, %9, %cst_8 {dimension_numbers = #tpu.dot_dimension_numbers<[1], [0], [0], [1], [0, 0, 1, 1], [], []>} : vector<64x256xbf16>, vector<256x8xbf16>, vector<64x8xf32> -> vector<64x8xf32>
    %c0_9 = arith.constant 0 : index
    %c0_10 = arith.constant 0 : index
    %12 = vector.load %arg5[%c0_9, %c0_10] : memref<64x1xf32, #tpu.memory_space<vmem>>, vector<64x1xf32>
    %13 = vector.broadcast %12 : vector<64x1xf32> to vector<64x8xf32>
    %14 = arith.addf %11, %13 : vector<64x8xf32>
    %cst_11 = arith.constant 0.000000e+00 : f32
    %15 = vector.broadcast %cst_11 : f32 to vector<64x8xf32>
    %16 = arith.maximumf %14, %15 : vector<64x8xf32>
    %17 = arith.truncf %16 : vector<64x8xf32> to vector<64x8xbf16>
    %c0_12 = arith.constant 0 : index
    %c0_13 = arith.constant 0 : index
    %18 = vector.load %arg6[%c0_12, %c0_13] : memref<16x64xbf16, #tpu.memory_space<vmem>>, vector<16x64xbf16>
    %cst_14 = arith.constant dense<0.000000e+00> : vector<16x8xf32>
    %19 = tpu.matmul %18, %17, %cst_14 {dimension_numbers = #tpu.dot_dimension_numbers<[1], [0], [0], [1], [0, 0, 1, 1], [], []>} : vector<16x64xbf16>, vector<64x8xbf16>, vector<16x8xf32> -> vector<16x8xf32>
    %c0_15 = arith.constant 0 : index
    %c0_16 = arith.constant 0 : index
    %20 = vector.load %arg7[%c0_15, %c0_16] : memref<16x1xf32, #tpu.memory_space<vmem>>, vector<16x1xf32>
    %21 = vector.broadcast %20 : vector<16x1xf32> to vector<16x8xf32>
    %22 = arith.addf %19, %21 : vector<16x8xf32>
    %cst_17 = arith.constant 0.000000e+00 : f32
    %23 = vector.broadcast %cst_17 : f32 to vector<16x8xf32>
    %24 = arith.maximumf %22, %23 : vector<16x8xf32>
    %25 = arith.truncf %24 : vector<16x8xf32> to vector<16x8xbf16>
    %c0_18 = arith.constant 0 : index
    %c0_19 = arith.constant 0 : index
    %26 = vector.load %arg8[%c0_18, %c0_19] : memref<3x16xbf16, #tpu.memory_space<vmem>>, vector<3x16xbf16>
    %cst_20 = arith.constant dense<0.000000e+00> : vector<3x8xf32>
    %27 = tpu.matmul %26, %25, %cst_20 {dimension_numbers = #tpu.dot_dimension_numbers<[1], [0], [0], [1], [0, 0, 1, 1], [], []>} : vector<3x16xbf16>, vector<16x8xbf16>, vector<3x8xf32> -> vector<3x8xf32>
    %c0_21 = arith.constant 0 : index
    %c0_22 = arith.constant 0 : index
    %28 = vector.load %arg9[%c0_21, %c0_22] : memref<3x1xf32, #tpu.memory_space<vmem>>, vector<3x1xf32>
    %29 = vector.broadcast %28 : vector<3x1xf32> to vector<3x8xf32>
    %30 = arith.addf %27, %29 : vector<3x8xf32>
    %cst_23 = arith.constant dense<0xFF800000> : vector<8xf32>
    %31 = vector.multi_reduction <maximumf>, %30, %cst_23 [0] : vector<3x8xf32> to vector<8xf32>
    %32 = vector.shape_cast %31 : vector<8xf32> to vector<1x8xf32>
    %33 = vector.broadcast %32 : vector<1x8xf32> to vector<3x8xf32>
    %34 = arith.subf %30, %33 : vector<3x8xf32>
    %35 = math.exp %34 : vector<3x8xf32>
    %cst_24 = arith.constant dense<0.000000e+00> : vector<8xf32>
    %36 = vector.multi_reduction <add>, %35, %cst_24 [0] : vector<3x8xf32> to vector<8xf32>
    %37 = vector.shape_cast %36 : vector<8xf32> to vector<1x8xf32>
    %38 = tpu.reciprocal %37 {approx = true} : vector<1x8xf32> -> vector<1x8xf32>
    %39 = vector.broadcast %38 : vector<1x8xf32> to vector<3x8xf32>
    %40 = arith.mulf %35, %39 : vector<3x8xf32>
    %c0_25 = arith.constant 0 : index
    %c0_26 = arith.constant 0 : index
    %41 = vector.load %arg10[%c0_25, %c0_26] : memref<3x8xf32, #tpu.memory_space<vmem>>, vector<3x8xf32>
    tpu.vector_store %arg10[%c0_25, %c0_26], %40 {strides = array<i32>} : memref<3x8xf32, #tpu.memory_space<vmem>>, vector<3x8xf32>,
    return
  }
  func.func @transform_0(%arg0: i32) -> (i32, i32) {
    %c0_i32 = arith.constant 0 : i32
    %c0_i32_0 = arith.constant 0 : i32
    return %arg0, %c0_i32 : i32, i32
  }
  func.func @transform_1(%arg0: i32) -> (i32, i32) {
    %c0_i32 = arith.constant 0 : i32
    %c0_i32_0 = arith.constant 0 : i32
    %c0_i32_1 = arith.constant 0 : i32
    return %c0_i32, %c0_i32_0 : i32, i32
  }
  func.func @transform_2(%arg0: i32) -> (i32, i32) {
    %c0_i32 = arith.constant 0 : i32
    %c0_i32_0 = arith.constant 0 : i32
    %c0_i32_1 = arith.constant 0 : i32
    return %c0_i32, %c0_i32_0 : i32, i32
  }
  func.func @transform_3(%arg0: i32) -> (i32, i32) {
    %c0_i32 = arith.constant 0 : i32
    %c0_i32_0 = arith.constant 0 : i32
    %c0_i32_1 = arith.constant 0 : i32
    return %c0_i32, %c0_i32_0 : i32, i32
  }
  func.func @transform_4(%arg0: i32) -> (i32, i32) {
    %c0_i32 = arith.constant 0 : i32
    %c0_i32_0 = arith.constant 0 : i32
    %c0_i32_1 = arith.constant 0 : i32
    return %c0_i32, %c0_i32_0 : i32, i32
  }
  func.func @transform_5(%arg0: i32) -> (i32, i32) {
    %c0_i32 = arith.constant 0 : i32
    %c0_i32_0 = arith.constant 0 : i32
    %c0_i32_1 = arith.constant 0 : i32
    return %c0_i32, %c0_i32_0 : i32, i32
  }
  func.func @transform_6(%arg0: i32) -> (i32, i32) {
    %c0_i32 = arith.constant 0 : i32
    %c0_i32_0 = arith.constant 0 : i32
    %c0_i32_1 = arith.constant 0 : i32
    return %c0_i32, %c0_i32_0 : i32, i32
  }
  func.func @transform_7(%arg0: i32) -> (i32, i32) {
    %c0_i32 = arith.constant 0 : i32
    %c0_i32_0 = arith.constant 0 : i32
    %c0_i32_1 = arith.constant 0 : i32
    return %c0_i32, %c0_i32_0 : i32, i32
  }
  func.func @transform_8(%arg0: i32) -> (i32, i32) {
    %c0_i32 = arith.constant 0 : i32
    %c0_i32_0 = arith.constant 0 : i32
    %c0_i32_1 = arith.constant 0 : i32
    return %c0_i32, %c0_i32_0 : i32, i32
  }
  func.func @transform_9(%arg0: i32) -> (i32, i32) {
    %c0_i32 = arith.constant 0 : i32
    %c0_i32_0 = arith.constant 0 : i32
    return %c0_i32, %arg0 : i32, i32
  }
}

</mosaic_0001>

<llo_original>
// kernel: tpu_custom_call.1
$region0: #{tpu_custom_call.1}
  #allocation0 [shape = 'u32[]', space=smem, size = 0x4, offset = 0x4, fixed_abs, tag = 'smem constant byte address 0x4 - core index']
  #allocation1 [shape = 'u32[144,128]{1,0:T(1,128)}', space=vmem, size = 0x12000, scoped, tag = 'internal scratch']
  %s0 = inlined_call_operand.vmem [shape: f32[8,128], index: 0, kind: input, shape index: {}]
  %s1 = inlined_call_operand.vmem [shape: bf16[256,128], index: 1, kind: input, shape index: {}]
  %s2 = inlined_call_operand.vmem [shape: f32[256,1], index: 2, kind: input, shape index: {}]
  %s3 = inlined_call_operand.vmem [shape: bf16[64,256], index: 3, kind: input, shape index: {}]
  %s4 = inlined_call_operand.vmem [shape: f32[64,1], index: 4, kind: input, shape index: {}]
  %s5 = inlined_call_operand.vmem [shape: bf16[16,64], index: 5, kind: input, shape index: {}]
  %s6 = inlined_call_operand.vmem [shape: f32[16,1], index: 6, kind: input, shape index: {}]
  %s7 = inlined_call_operand.vmem [shape: bf16[3,16], index: 7, kind: input, shape index: {}]
  %s8 = inlined_call_operand.vmem [shape: f32[3,1], index: 8, kind: input, shape index: {}]
  %s9 = inlined_call_operand.hbm [shape: f32[3,8], index: 9, kind: output, shape index: {}]
  %s10 = sld [smem:[#allocation0]]
  $region46: #{tpu_custom_call.1} parent=0
    _
  %s12 = ssub.s32 1, %s10
  %s13 = scalar_select 0, %s12, %s10
  $region1: #{tpu_custom_call.1} parent=0
    #allocation2 [shape = 'u8[2048]{0}', space=vmem, size = 0x800, scoped, tag = 'output window, operand 0, single buffered']
    #allocation3 [shape = 's32[1]{0}', space=sflag, size = 0x4, scoped, tag = 'scoped memory for tpu_custom_call.1']
    %14 = vsyncpa [#allocation3], 0
    // Predicated region
    $region2: #{tpu_custom_call.1} parent=1 // pred_check
      _
    $region3: #{tpu_custom_call.1} parent=1 // pred_check_branch
      %16 = sbr.rel (0) target = $region5
    $region4: #{tpu_custom_call.1} parent=1 // pred_region
      _
    $region5: #{tpu_custom_call.1} parent=1 // pred_fallthru
      _
    // Predicated region
    $region6: #{tpu_custom_call.1} parent=1 // pred_check
      _
    $region7: #{tpu_custom_call.1} parent=1 // pred_check_branch
      %18 = sbr.rel (0) target = $region9
    $region8: #{tpu_custom_call.1} parent=1 // pred_region
      _
    $region9: #{tpu_custom_call.1} parent=1 // pred_fallthru
      _
    // Predicated region
    $region10: #{tpu_custom_call.1} parent=1 // pred_check
      _
    $region11: #{tpu_custom_call.1} parent=1 // pred_check_branch
      %20 = sbr.rel (0) target = $region13
    $region12: #{tpu_custom_call.1} parent=1 // pred_region
      _
    $region13: #{tpu_custom_call.1} parent=1 // pred_fallthru
      _
    // Predicated region
    $region14: #{tpu_custom_call.1} parent=1 // pred_check
      _
    $region15: #{tpu_custom_call.1} parent=1 // pred_check_branch
      %22 = sbr.rel (0) target = $region17
    $region16: #{tpu_custom_call.1} parent=1 // pred_region
      _
    $region17: #{tpu_custom_call.1} parent=1 // pred_fallthru
      _
    // Predicated region
    $region18: #{tpu_custom_call.1} parent=1 // pred_check
      _
    $region19: #{tpu_custom_call.1} parent=1 // pred_check_branch
      %24 = sbr.rel (0) target = $region21
    $region20: #{tpu_custom_call.1} parent=1 // pred_region
      _
    $region21: #{tpu_custom_call.1} parent=1 // pred_fallthru
      _
    // Predicated region
    $region22: #{tpu_custom_call.1} parent=1 // pred_check
      _
    $region23: #{tpu_custom_call.1} parent=1 // pred_check_branch
      %26 = sbr.rel (0) target = $region25
    $region24: #{tpu_custom_call.1} parent=1 // pred_region
      _
    $region25: #{tpu_custom_call.1} parent=1 // pred_fallthru
      _
    // Predicated region
    $region26: #{tpu_custom_call.1} parent=1 // pred_check
      _
    $region27: #{tpu_custom_call.1} parent=1 // pred_check_branch
      %28 = sbr.rel (0) target = $region29
    $region28: #{tpu_custom_call.1} parent=1 // pred_region
      _
    $region29: #{tpu_custom_call.1} parent=1 // pred_fallthru
      _
    // Predicated region
    $region30: #{tpu_custom_call.1} parent=1 // pred_check
      _
    $region31: #{tpu_custom_call.1} parent=1 // pred_check_branch
      %30 = sbr.rel (0) target = $region33
    $region32: #{tpu_custom_call.1} parent=1 // pred_region
      _
    $region33: #{tpu_custom_call.1} parent=1 // pred_fallthru
      _
    // Predicated region
    $region34: #{tpu_custom_call.1} parent=1 // pred_check
      _
    $region35: #{tpu_custom_call.1} parent=1 // pred_check_branch
      %32 = sbr.rel (0) target = $region37
    $region36: #{tpu_custom_call.1} parent=1 // pred_region
      _
    $region37: #{tpu_custom_call.1} parent=1 // pred_fallthru
      _
    %v34 = vld [vmem:[%s0] sm:$0xff]
    %v35 = vpack.c.bf16 %v34, %v34
    %v36 = vld [vmem:[%s1] sm:$0xf]
    %v37 = vld [vmem:[%s1 + $0x4] sm:$0xf]
    %v38 = vld [vmem:[%s1 + $0x8] sm:$0xf]
    %v39 = vld [vmem:[%s1 + $0xc] sm:$0xf]
    %v40 = vld [vmem:[%s1 + $0x10] sm:$0xf]
    %v41 = vld [vmem:[%s1 + $0x14] sm:$0xf]
    %v42 = vld [vmem:[%s1 + $0x18] sm:$0xf]
    %v43 = vld [vmem:[%s1 + $0x1c] sm:$0xf]
    %v44 = vld [vmem:[%s1 + $0x20] sm:$0xf]
    %v45 = vld [vmem:[%s1 + $0x24] sm:$0xf]
    %v46 = vld [vmem:[%s1 + $0x28] sm:$0xf]
    %v47 = vld [vmem:[%s1 + $0x2c] sm:$0xf]
    %v48 = vld [vmem:[%s1 + $0x30] sm:$0xf]
    %v49 = vld [vmem:[%s1 + $0x34] sm:$0xf]
    %v50 = vld [vmem:[%s1 + $0x38] sm:$0xf]
    %v51 = vld [vmem:[%s1 + $0x3c] sm:$0xf]
    %v52 = vld [vmem:[%s1 + $0x40] sm:$0xf]
    %v53 = vld [vmem:[%s1 + $0x44] sm:$0xf]
    %v54 = vld [vmem:[%s1 + $0x48] sm:$0xf]
    %v55 = vld [vmem:[%s1 + $0x4c] sm:$0xf]
    %v56 = vld [vmem:[%s1 + $0x50] sm:$0xf]
    %v57 = vld [vmem:[%s1 + $0x54] sm:$0xf]
    %v58 = vld [vmem:[%s1 + $0x58] sm:$0xf]
    %v59 = vld [vmem:[%s1 + $0x5c] sm:$0xf]
    %v60 = vld [vmem:[%s1 + $0x60] sm:$0xf]
    %v61 = vld [vmem:[%s1 + $0x64] sm:$0xf]
    %v62 = vld [vmem:[%s1 + $0x68] sm:$0xf]
    %v63 = vld [vmem:[%s1 + $0x6c] sm:$0xf]
    %v64 = vld [vmem:[%s1 + $0x70] sm:$0xf]
    %v65 = vld [vmem:[%s1 + $0x74] sm:$0xf]
    %v66 = vld [vmem:[%s1 + $0x78] sm:$0xf]
    %v67 = vld [vmem:[%s1 + $0x7c] sm:$0xf]
    %v68 = vld [vmem:[%s2] sm:$0xff]
    %v69 = vld [vmem:[%s2 + $0x8] sm:$0xff]
    %v70 = vld [vmem:[%s2 + $0x10] sm:$0xff]
    %v71 = vld [vmem:[%s2 + $0x18] sm:$0xff]
    %v72 = vld [vmem:[%s2 + $0x20] sm:$0xff]
    %v73 = vld [vmem:[%s2 + $0x28] sm:$0xff]
    %v74 = vld [vmem:[%s2 + $0x30] sm:$0xff]
    %v75 = vld [vmem:[%s2 + $0x38] sm:$0xff]
    %v76 = vld [vmem:[%s2 + $0x40] sm:$0xff]
    %v77 = vld [vmem:[%s2 + $0x48] sm:$0xff]
    %v78 = vld [vmem:[%s2 + $0x50] sm:$0xff]
    %v79 = vld [vmem:[%s2 + $0x58] sm:$0xff]
    %v80 = vld [vmem:[%s2 + $0x60] sm:$0xff]
    %v81 = vld [vmem:[%s2 + $0x68] sm:$0xff]
    %v82 = vld [vmem:[%s2 + $0x70] sm:$0xff]
    %v83 = vld [vmem:[%s2 + $0x78] sm:$0xff]
    %v84 = vld [vmem:[%s2 + $0x80] sm:$0xff]
    %v85 = vld [vmem:[%s2 + $0x88] sm:$0xff]
    %v86 = vld [vmem:[%s2 + $0x90] sm:$0xff]
    %v87 = vld [vmem:[%s2 + $0x98] sm:$0xff]
    %v88 = vld [vmem:[%s2 + $0xa0] sm:$0xff]
    %v89 = vld [vmem:[%s2 + $0xa8] sm:$0xff]
    %v90 = vld [vmem:[%s2 + $0xb0] sm:$0xff]
    %v91 = vld [vmem:[%s2 + $0xb8] sm:$0xff]
    %v92 = vld [vmem:[%s2 + $0xc0] sm:$0xff]
    %v93 = vld [vmem:[%s2 + $0xc8] sm:$0xff]
    %v94 = vld [vmem:[%s2 + $0xd0] sm:$0xff]
    %v95 = vld [vmem:[%s2 + $0xd8] sm:$0xff]
    %v96 = vld [vmem:[%s2 + $0xe0] sm:$0xff]
    %v97 = vld [vmem:[%s2 + $0xe8] sm:$0xff]
    %v98 = vld [vmem:[%s2 + $0xf0] sm:$0xff]
    %v99 = vld [vmem:[%s2 + $0xf8] sm:$0xff]
    %101 = vset.pattern.permute.xlu0 0
    %102 = vperm.xlu0 %101, %v68
    %v103 = vpop.permute.xlu0 %102
    %106 = vset.pattern.permute.xlu0 0
    %107 = vperm.xlu0 %106, %v69
    %v108 = vpop.permute.xlu0 %107
    %111 = vset.pattern.permute.xlu0 0
    %112 = vperm.xlu0 %111, %v70
    %v113 = vpop.permute.xlu0 %112
    %116 = vset.pattern.permute.xlu0 0
    %117 = vperm.xlu0 %116, %v71
    %v118 = vpop.permute.xlu0 %117
    %121 = vset.pattern.permute.xlu0 0
    %122 = vperm.xlu0 %121, %v72
    %v123 = vpop.permute.xlu0 %122
    %126 = vset.pattern.permute.xlu0 0
    %127 = vperm.xlu0 %126, %v73
    %v128 = vpop.permute.xlu0 %127
    %131 = vset.pattern.permute.xlu0 0
    %132 = vperm.xlu0 %131, %v74
    %v133 = vpop.permute.xlu0 %132
    %136 = vset.pattern.permute.xlu0 0
    %137 = vperm.xlu0 %136, %v75
    %v138 = vpop.permute.xlu0 %137
    %141 = vset.pattern.permute.xlu0 0
    %142 = vperm.xlu0 %141, %v76
    %v143 = vpop.permute.xlu0 %142
    %146 = vset.pattern.permute.xlu0 0
    %147 = vperm.xlu0 %146, %v77
    %v148 = vpop.permute.xlu0 %147
    %151 = vset.pattern.permute.xlu0 0
    %152 = vperm.xlu0 %151, %v78
    %v153 = vpop.permute.xlu0 %152
    %156 = vset.pattern.permute.xlu0 0
    %157 = vperm.xlu0 %156, %v79
    %v158 = vpop.permute.xlu0 %157
    %161 = vset.pattern.permute.xlu0 0
    %162 = vperm.xlu0 %161, %v80
    %v163 = vpop.permute.xlu0 %162
    %166 = vset.pattern.permute.xlu0 0
    %167 = vperm.xlu0 %166, %v81
    %v168 = vpop.permute.xlu0 %167
    %171 = vset.pattern.permute.xlu0 0
    %172 = vperm.xlu0 %171, %v82
    %v173 = vpop.permute.xlu0 %172
    %176 = vset.pattern.permute.xlu0 0
    %177 = vperm.xlu0 %176, %v83
    %v178 = vpop.permute.xlu0 %177
    %181 = vset.pattern.permute.xlu0 0
    %182 = vperm.xlu0 %181, %v84
    %v183 = vpop.permute.xlu0 %182
    %186 = vset.pattern.permute.xlu0 0
    %187 = vperm.xlu0 %186, %v85
    %v188 = vpop.permute.xlu0 %187
    %191 = vset.pattern.permute.xlu0 0
    %192 = vperm.xlu0 %191, %v86
    %v193 = vpop.permute.xlu0 %192
    %196 = vset.pattern.permute.xlu0 0
    %197 = vperm.xlu0 %196, %v87
    %v198 = vpop.permute.xlu0 %197
    %201 = vset.pattern.permute.xlu0 0
    %202 = vperm.xlu0 %201, %v88
    %v203 = vpop.permute.xlu0 %202
    %206 = vset.pattern.permute.xlu0 0
    %207 = vperm.xlu0 %206, %v89
    %v208 = vpop.permute.xlu0 %207
    %211 = vset.pattern.permute.xlu0 0
    %212 = vperm.xlu0 %211, %v90
    %v213 = vpop.permute.xlu0 %212
    %216 = vset.pattern.permute.xlu0 0
    %217 = vperm.xlu0 %216, %v91
    %v218 = vpop.permute.xlu0 %217
    %221 = vset.pattern.permute.xlu0 0
    %222 = vperm.xlu0 %221, %v92
    %v223 = vpop.permute.xlu0 %222
    %226 = vset.pattern.permute.xlu0 0
    %227 = vperm.xlu0 %226, %v93
    %v228 = vpop.permute.xlu0 %227
    %231 = vset.pattern.permute.xlu0 0
    %232 = vperm.xlu0 %231, %v94
    %v233 = vpop.permute.xlu0 %232
    %236 = vset.pattern.permute.xlu0 0
    %237 = vperm.xlu0 %236, %v95
    %v238 = vpop.permute.xlu0 %237
    %241 = vset.pattern.permute.xlu0 0
    %242 = vperm.xlu0 %241, %v96
    %v243 = vpop.permute.xlu0 %242
    %246 = vset.pattern.permute.xlu0 0
    %247 = vperm.xlu0 %246, %v97
    %v248 = vpop.permute.xlu0 %247
    %251 = vset.pattern.permute.xlu0 0
    %252 = vperm.xlu0 %251, %v98
    %v253 = vpop.permute.xlu0 %252
    %256 = vset.pattern.permute.xlu0 0
    %257 = vperm.xlu0 %256, %v99
    %v258 = vpop.permute.xlu0 %257
    %v292 = vunpack.c.l.b16 %v36
    %v293 = vunpack.c.l.b16 %v37
    %v294 = vunpack.c.l.b16 %v38
    %v295 = vunpack.c.l.b16 %v39
    %v296 = vunpack.c.l.b16 %v40
    %v297 = vunpack.c.l.b16 %v41
    %v298 = vunpack.c.l.b16 %v42
    %v299 = vunpack.c.l.b16 %v43
    %v300 = vunpack.c.l.b16 %v44
    %v301 = vunpack.c.l.b16 %v45
    %v302 = vunpack.c.l.b16 %v46
    %v303 = vunpack.c.l.b16 %v47
    %v304 = vunpack.c.l.b16 %v48
    %v305 = vunpack.c.l.b16 %v49
    %v306 = vunpack.c.l.b16 %v50
    %v307 = vunpack.c.l.b16 %v51
    %v308 = vunpack.c.l.b16 %v52
    %v309 = vunpack.c.l.b16 %v53
    %v310 = vunpack.c.l.b16 %v54
    %v311 = vunpack.c.l.b16 %v55
    %v312 = vunpack.c.l.b16 %v56
    %v313 = vunpack.c.l.b16 %v57
    %v314 = vunpack.c.l.b16 %v58
    %v315 = vunpack.c.l.b16 %v59
    %v316 = vunpack.c.l.b16 %v60
    %v317 = vunpack.c.l.b16 %v61
    %v318 = vunpack.c.l.b16 %v62
    %v319 = vunpack.c.l.b16 %v63
    %v320 = vunpack.c.l.b16 %v64
    %v321 = vunpack.c.l.b16 %v65
    %v322 = vunpack.c.l.b16 %v66
    %v323 = vunpack.c.l.b16 %v67
    %v324 = vpack.c.b16 %v293, %v292
    %v325 = vpack.c.b16 %v295, %v294
    %v326 = vpack.c.b16 %v297, %v296
    %v327 = vpack.c.b16 %v299, %v298
    %v328 = vpack.c.b16 %v301, %v300
    %v329 = vpack.c.b16 %v303, %v302
    %v330 = vpack.c.b16 %v305, %v304
    %v331 = vpack.c.b16 %v307, %v306
    %v332 = vpack.c.b16 %v309, %v308
    %v333 = vpack.c.b16 %v311, %v310
    %v334 = vpack.c.b16 %v313, %v312
    %v335 = vpack.c.b16 %v315, %v314
    %v336 = vpack.c.b16 %v317, %v316
    %v337 = vpack.c.b16 %v319, %v318
    %v338 = vpack.c.b16 %v321, %v320
    %v339 = vpack.c.b16 %v323, %v322
    %356 = vmatprep.subr.bf16.mxu0 0
    %357 = vmatpush1.bf16.xpose.msra.mxu0 %v35
    %358 = vmatprep.subr.bf16.mxu0 0
    %359 = vmatpush1.bf16.xpose.msra.mxu0 0
    %360 = vmatprep.subr.bf16.mxu0 0
    %361 = vmatpush1.bf16.xpose.msra.mxu0 0
    %362 = vmatprep.subr.bf16.mxu0 0
    %363 = vmatpush1.bf16.xpose.msra.mxu0 0
    %364 = vmatprep.subr.bf16.mxu0 0
    %365 = vmatpush1.bf16.xpose.msra.mxu0 0
    %366 = vmatprep.subr.bf16.mxu0 0
    %367 = vmatpush1.bf16.xpose.msra.mxu0 0
    %368 = vmatprep.subr.bf16.mxu0 0
    %369 = vmatpush1.bf16.xpose.msra.mxu0 0
    %370 = vmatprep.subr.bf16.mxu0 0
    %371 = vmatpush1.bf16.xpose.msra.mxu0 0
    %372 = vmatprep.subr.bf16.mxu0 0
    %373 = vmatpush1.bf16.xpose.msra.mxu0 0
    %374 = vmatprep.subr.bf16.mxu0 0
    %375 = vmatpush1.bf16.xpose.msra.mxu0 0
    %376 = vmatprep.subr.bf16.mxu0 0
    %377 = vmatpush1.bf16.xpose.msra.mxu0 0
    %378 = vmatprep.subr.bf16.mxu0 0
    %379 = vmatpush1.bf16.xpose.msra.mxu0 0
    %380 = vmatprep.subr.bf16.mxu0 0
    %381 = vmatpush1.bf16.xpose.msra.mxu0 0
    %382 = vmatprep.subr.bf16.mxu0 0
    %383 = vmatpush1.bf16.xpose.msra.mxu0 0
    %384 = vmatprep.subr.bf16.mxu0 0
    %385 = vmatpush1.bf16.xpose.msra.mxu0 0
    %386 = vmatprep.subr.bf16.mxu0 0
    %387 = vmatpush1.bf16.xpose.msra.mxu0 0
    %388 = vmatprep.mubr.bf16.mxu0 0
    %389 = vmatmul.mubr.bf16.gmra.mrb[0].mxu0 %v324
    %v390 = vpop.f32.mrb[0].mxu0
    %v391 = vadd.f32 %v103, %v390
    %v392 = vpop.f32.mrb[0].mxu0
    %v393 = vpop.f32.mrb[0].mxu0
    %v394 = vadd.f32 %v108, %v393
    %v395 = vpop.f32.mrb[0].mxu0
    %396 = vmatprep.mubr.bf16.mxu0 0
    %397 = vmatmul.mubr.bf16.gmra.mrb[0].mxu0 %v325
    %v398 = vpop.f32.mrb[0].mxu0
    %v399 = vadd.f32 %v113, %v398
    %v400 = vpop.f32.mrb[0].mxu0
    %v401 = vpop.f32.mrb[0].mxu0
    %v402 = vadd.f32 %v118, %v401
    %v403 = vpop.f32.mrb[0].mxu0
    %404 = vmatprep.mubr.bf16.mxu0 0
    %405 = vmatmul.mubr.bf16.gmra.mrb[0].mxu0 %v326
    %v406 = vpop.f32.mrb[0].mxu0
    %v407 = vadd.f32 %v123, %v406
    %v408 = vpop.f32.mrb[0].mxu0
    %v409 = vpop.f32.mrb[0].mxu0
    %v410 = vadd.f32 %v128, %v409
    %v411 = vpop.f32.mrb[0].mxu0
    %412 = vmatprep.mubr.bf16.mxu0 0
    %413 = vmatmul.mubr.bf16.gmra.mrb[0].mxu0 %v327
    %v414 = vpop.f32.mrb[0].mxu0
    %v415 = vadd.f32 %v133, %v414
    %v416 = vpop.f32.mrb[0].mxu0
    %v417 = vpop.f32.mrb[0].mxu0
    %v418 = vadd.f32 %v138, %v417
    %v419 = vpop.f32.mrb[0].mxu0
    %420 = vmatprep.mubr.bf16.mxu0 0
    %421 = vmatmul.mubr.bf16.gmra.mrb[0].mxu0 %v328
    %v422 = vpop.f32.mrb[0].mxu0
    %v423 = vadd.f32 %v143, %v422
    %v424 = vpop.f32.mrb[0].mxu0
    %v425 = vpop.f32.mrb[0].mxu0
    %v426 = vadd.f32 %v148, %v425
    %v427 = vpop.f32.mrb[0].mxu0
    %428 = vmatprep.mubr.bf16.mxu0 0
    %429 = vmatmul.mubr.bf16.gmra.mrb[0].mxu0 %v329
    %v430 = vpop.f32.mrb[0].mxu0
    %v431 = vadd.f32 %v153, %v430
    %v432 = vpop.f32.mrb[0].mxu0
    %v433 = vpop.f32.mrb[0].mxu0
    %v434 = vadd.f32 %v158, %v433
    %v435 = vpop.f32.mrb[0].mxu0
    %436 = vmatprep.mubr.bf16.mxu0 0
    %437 = vmatmul.mubr.bf16.gmra.mrb[0].mxu0 %v330
    %v438 = vpop.f32.mrb[0].mxu0
    %v439 = vadd.f32 %v163, %v438
    %v440 = vpop.f32.mrb[0].mxu0
    %v441 = vpop.f32.mrb[0].mxu0
    %v442 = vadd.f32 %v168, %v441
    %v443 = vpop.f32.mrb[0].mxu0
    %444 = vmatprep.mubr.bf16.mxu0 0
    %445 = vmatmul.mubr.bf16.gmra.mrb[0].mxu0 %v331
    %v446 = vpop.f32.mrb[0].mxu0
    %v447 = vadd.f32 %v173, %v446
    %v448 = vpop.f32.mrb[0].mxu0
    %v449 = vpop.f32.mrb[0].mxu0
    %v450 = vadd.f32 %v178, %v449
    %v451 = vpop.f32.mrb[0].mxu0
    %452 = vmatprep.mubr.bf16.mxu0 0
    %453 = vmatmul.mubr.bf16.gmra.mrb[0].mxu0 %v332
    %v454 = vpop.f32.mrb[0].mxu0
    %v455 = vadd.f32 %v183, %v454
    %v456 = vpop.f32.mrb[0].mxu0
    %v457 = vpop.f32.mrb[0].mxu0
    %v458 = vadd.f32 %v188, %v457
    %v459 = vpop.f32.mrb[0].mxu0
    %460 = vmatprep.mubr.bf16.mxu0 0
    %461 = vmatmul.mubr.bf16.gmra.mrb[0].mxu0 %v333
    %v462 = vpop.f32.mrb[0].mxu0
    %v463 = vadd.f32 %v193, %v462
    %v464 = vpop.f32.mrb[0].mxu0
    %v465 = vpop.f32.mrb[0].mxu0
    %v466 = vadd.f32 %v198, %v465
    %v467 = vpop.f32.mrb[0].mxu0
    %468 = vmatprep.mubr.bf16.mxu0 0
    %469 = vmatmul.mubr.bf16.gmra.mrb[0].mxu0 %v334
    %v470 = vpop.f32.mrb[0].mxu0
    %v471 = vadd.f32 %v203, %v470
    %v472 = vpop.f32.mrb[0].mxu0
    %v473 = vpop.f32.mrb[0].mxu0
    %v474 = vadd.f32 %v208, %v473
    %v475 = vpop.f32.mrb[0].mxu0
    %476 = vmatprep.mubr.bf16.mxu0 0
    %477 = vmatmul.mubr.bf16.gmra.mrb[0].mxu0 %v335
    %v478 = vpop.f32.mrb[0].mxu0
    %v479 = vadd.f32 %v213, %v478
    %v480 = vpop.f32.mrb[0].mxu0
    %v481 = vpop.f32.mrb[0].mxu0
    %v482 = vadd.f32 %v218, %v481
    %v483 = vpop.f32.mrb[0].mxu0
    %484 = vmatprep.mubr.bf16.mxu0 0
    %485 = vmatmul.mubr.bf16.gmra.mrb[0].mxu0 %v336
    %v486 = vpop.f32.mrb[0].mxu0
    %v487 = vadd.f32 %v223, %v486
    %v488 = vpop.f32.mrb[0].mxu0
    %v489 = vpop.f32.mrb[0].mxu0
    %v490 = vadd.f32 %v228, %v489
    %v491 = vpop.f32.mrb[0].mxu0
    %492 = vmatprep.mubr.bf16.mxu0 0
    %493 = vmatmul.mubr.bf16.gmra.mrb[0].mxu0 %v337
    %v494 = vpop.f32.mrb[0].mxu0
    %v495 = vadd.f32 %v233, %v494
    %v496 = vpop.f32.mrb[0].mxu0
    %v497 = vpop.f32.mrb[0].mxu0
    %v498 = vadd.f32 %v238, %v497
    %v499 = vpop.f32.mrb[0].mxu0
    %500 = vmatprep.mubr.bf16.mxu0 0
    %501 = vmatmul.mubr.bf16.gmra.mrb[0].mxu0 %v338
    %v502 = vpop.f32.mrb[0].mxu0
    %v503 = vadd.f32 %v243, %v502
    %v504 = vpop.f32.mrb[0].mxu0
    %v505 = vpop.f32.mrb[0].mxu0
    %v506 = vadd.f32 %v248, %v505
    %v507 = vpop.f32.mrb[0].mxu0
    %508 = vmatprep.mubr.bf16.mxu0 0
    %509 = vmatmul.mubr.bf16.gmra.mrb[0].mxu0 %v339
    %v510 = vpop.f32.mrb[0].mxu0
    %v511 = vadd.f32 %v253, %v510
    %v512 = vpop.f32.mrb[0].mxu0
    %v513 = vpop.f32.mrb[0].mxu0
    %v514 = vadd.f32 %v258, %v513
    %v515 = vpop.f32.mrb[0].mxu0
    %516 = vdwg.mxu0
    %v517 = vmax.f32 %v391, 0.0
    %v518 = vmax.f32 %v394, 0.0
    %v519 = vmax.f32 %v399, 0.0
    %v520 = vmax.f32 %v402, 0.0
    %v521 = vmax.f32 %v407, 0.0
    %v522 = vmax.f32 %v410, 0.0
    %v523 = vmax.f32 %v415, 0.0
    %v524 = vmax.f32 %v418, 0.0
    %v525 = vmax.f32 %v423, 0.0
    %v526 = vmax.f32 %v426, 0.0
    %v527 = vmax.f32 %v431, 0.0
    %v528 = vmax.f32 %v434, 0.0
    %v529 = vmax.f32 %v439, 0.0
    %v530 = vmax.f32 %v442, 0.0
    %v531 = vmax.f32 %v447, 0.0
    %v532 = vmax.f32 %v450, 0.0
    %v533 = vmax.f32 %v455, 0.0
    %v534 = vmax.f32 %v458, 0.0
    %v535 = vmax.f32 %v463, 0.0
    %v536 = vmax.f32 %v466, 0.0
    %v537 = vmax.f32 %v471, 0.0
    %v538 = vmax.f32 %v474, 0.0
    %v539 = vmax.f32 %v479, 0.0
    %v540 = vmax.f32 %v482, 0.0
    %v541 = vmax.f32 %v487, 0.0
    %v542 = vmax.f32 %v490, 0.0
    %v543 = vmax.f32 %v495, 0.0
    %v544 = vmax.f32 %v498, 0.0
    %v545 = vmax.f32 %v503, 0.0
    %v546 = vmax.f32 %v506, 0.0
    %v547 = vmax.f32 %v511, 0.0
    %v548 = vmax.f32 %v514, 0.0
    %v549 = vpack.c.bf16 %v518, %v517
    %v550 = vpack.c.bf16 %v520, %v519
    %v551 = vpack.c.bf16 %v522, %v521
    %v552 = vpack.c.bf16 %v524, %v523
    %v553 = vpack.c.bf16 %v526, %v525
    %v554 = vpack.c.bf16 %v528, %v527
    %v555 = vpack.c.bf16 %v530, %v529
    %v556 = vpack.c.bf16 %v532, %v531
    %v557 = vpack.c.bf16 %v534, %v533
    %v558 = vpack.c.bf16 %v536, %v535
    %v559 = vpack.c.bf16 %v538, %v537
    %v560 = vpack.c.bf16 %v540, %v539
    %v561 = vpack.c.bf16 %v542, %v541
    %v562 = vpack.c.bf16 %v544, %v543
    %v563 = vpack.c.bf16 %v546, %v545
    %v564 = vpack.c.bf16 %v548, %v547
    %v565 = vld [vmem:[%s3] sm:$0xff]
    %v566 = vld [vmem:[%s3 + $0x8] sm:$0xff]
    %v567 = vld [vmem:[%s3 + $0x10] sm:$0xff]
    %v568 = vld [vmem:[%s3 + $0x18] sm:$0xff]
    %v569 = vld [vmem:[%s3 + $0x20] sm:$0xff]
    %v570 = vld [vmem:[%s3 + $0x28] sm:$0xff]
    %v571 = vld [vmem:[%s3 + $0x30] sm:$0xff]
    %v572 = vld [vmem:[%s3 + $0x38] sm:$0xff]
    %v573 = vld [vmem:[%s4] sm:$0xff]
    %v574 = vld [vmem:[%s4 + $0x8] sm:$0xff]
    %v575 = vld [vmem:[%s4 + $0x10] sm:$0xff]
    %v576 = vld [vmem:[%s4 + $0x18] sm:$0xff]
    %v577 = vld [vmem:[%s4 + $0x20] sm:$0xff]
    %v578 = vld [vmem:[%s4 + $0x28] sm:$0xff]
    %v579 = vld [vmem:[%s4 + $0x30] sm:$0xff]
    %v580 = vld [vmem:[%s4 + $0x38] sm:$0xff]
    %582 = vset.pattern.permute.xlu0 0
    %583 = vperm.xlu0 %582, %v573
    %v584 = vpop.permute.xlu0 %583
    %587 = vset.pattern.permute.xlu0 0
    %588 = vperm.xlu0 %587, %v574
    %v589 = vpop.permute.xlu0 %588
    %592 = vset.pattern.permute.xlu0 0
    %593 = vperm.xlu0 %592, %v575
    %v594 = vpop.permute.xlu0 %593
    %597 = vset.pattern.permute.xlu0 0
    %598 = vperm.xlu0 %597, %v576
    %v599 = vpop.permute.xlu0 %598
    %602 = vset.pattern.permute.xlu0 0
    %603 = vperm.xlu0 %602, %v577
    %v604 = vpop.permute.xlu0 %603
    %607 = vset.pattern.permute.xlu0 0
    %608 = vperm.xlu0 %607, %v578
    %v609 = vpop.permute.xlu0 %608
    %612 = vset.pattern.permute.xlu0 0
    %613 = vperm.xlu0 %612, %v579
    %v614 = vpop.permute.xlu0 %613
    %617 = vset.pattern.permute.xlu0 0
    %618 = vperm.xlu0 %617, %v580
    %v619 = vpop.permute.xlu0 %618
    %v629 = vunpack.c.l.b16 %v565
    %v630 = vunpack.c.h.b16 %v565
    %v631 = vunpack.c.l.b16 %v566
    %v632 = vunpack.c.h.b16 %v566
    %v633 = vunpack.c.l.b16 %v567
    %v634 = vunpack.c.h.b16 %v567
    %v635 = vunpack.c.l.b16 %v568
    %v636 = vunpack.c.h.b16 %v568
    %v637 = vunpack.c.l.b16 %v569
    %v638 = vunpack.c.h.b16 %v569
    %v639 = vunpack.c.l.b16 %v570
    %v640 = vunpack.c.h.b16 %v570
    %v641 = vunpack.c.l.b16 %v571
    %v642 = vunpack.c.h.b16 %v571
    %v643 = vunpack.c.l.b16 %v572
    %v644 = vunpack.c.h.b16 %v572
    %v645 = vpack.c.b16 %v631, %v629
    %v646 = vpack.c.b16 %v632, %v630
    %v647 = vpack.c.b16 %v635, %v633
    %v648 = vpack.c.b16 %v636, %v634
    %v649 = vpack.c.b16 %v639, %v637
    %v650 = vpack.c.b16 %v640, %v638
    %v651 = vpack.c.b16 %v643, %v641
    %v652 = vpack.c.b16 %v644, %v642
    %661 = vmatprep.subr.bf16.mxu0 0
    %662 = vmatpush1.bf16.msra.mxu0 %v549
    %663 = vmatprep.subr.bf16.mxu0 0
    %664 = vmatpush1.bf16.msra.mxu0 %v550
    %665 = vmatprep.subr.bf16.mxu0 0
    %666 = vmatpush1.bf16.msra.mxu0 %v551
    %667 = vmatprep.subr.bf16.mxu0 0
    %668 = vmatpush1.bf16.msra.mxu0 %v552
    %669 = vmatprep.subr.bf16.mxu0 0
    %670 = vmatpush1.bf16.msra.mxu0 %v553
    %671 = vmatprep.subr.bf16.mxu0 0
    %672 = vmatpush1.bf16.msra.mxu0 %v554
    %673 = vmatprep.subr.bf16.mxu0 0
    %674 = vmatpush1.bf16.msra.mxu0 %v555
    %675 = vmatprep.subr.bf16.mxu0 0
    %676 = vmatpush1.bf16.msra.mxu0 %v556
    %677 = vmatprep.subr.bf16.mxu0 0
    %678 = vmatpush1.bf16.msra.mxu0 %v557
    %679 = vmatprep.subr.bf16.mxu0 0
    %680 = vmatpush1.bf16.msra.mxu0 %v558
    %681 = vmatprep.subr.bf16.mxu0 0
    %682 = vmatpush1.bf16.msra.mxu0 %v559
    %683 = vmatprep.subr.bf16.mxu0 0
    %684 = vmatpush1.bf16.msra.mxu0 %v560
    %685 = vmatprep.subr.bf16.mxu0 0
    %686 = vmatpush1.bf16.msra.mxu0 %v561
    %687 = vmatprep.subr.bf16.mxu0 0
    %688 = vmatpush1.bf16.msra.mxu0 %v562
    %689 = vmatprep.subr.bf16.mxu0 0
    %690 = vmatpush1.bf16.msra.mxu0 %v563
    %691 = vmatprep.subr.bf16.mxu0 0
    %692 = vmatpush1.bf16.msra.mxu0 %v564
    %693 = vmatprep.mubr.bf16.mxu0 %v646
    %694 = vmatmul.mubr.bf16.gmra.mrb[0].mxu0 %v645
    %v695 = vpop.f32.mrb[0].mxu0
    %v696 = vadd.f32 %v584, %v695
    %v697 = vpop.f32.mrb[0].mxu0
    %v698 = vpop.f32.mrb[0].mxu0
    %v699 = vadd.f32 %v589, %v698
    %v700 = vpop.f32.mrb[0].mxu0
    %701 = vmatprep.mubr.bf16.mxu0 %v648
    %702 = vmatmul.mubr.bf16.gmra.mrb[0].mxu0 %v647
    %v703 = vpop.f32.mrb[0].mxu0
    %v704 = vadd.f32 %v594, %v703
    %v705 = vpop.f32.mrb[0].mxu0
    %v706 = vpop.f32.mrb[0].mxu0
    %v707 = vadd.f32 %v599, %v706
    %v708 = vpop.f32.mrb[0].mxu0
    %709 = vmatprep.mubr.bf16.mxu0 %v650
    %710 = vmatmul.mubr.bf16.gmra.mrb[0].mxu0 %v649
    %v711 = vpop.f32.mrb[0].mxu0
    %v712 = vadd.f32 %v604, %v711
    %v713 = vpop.f32.mrb[0].mxu0
    %v714 = vpop.f32.mrb[0].mxu0
    %v715 = vadd.f32 %v609, %v714
    %v716 = vpop.f32.mrb[0].mxu0
    %717 = vmatprep.mubr.bf16.mxu0 %v652
    %718 = vmatmul.mubr.bf16.gmra.mrb[0].mxu0 %v651
    %v719 = vpop.f32.mrb[0].mxu0
    %v720 = vadd.f32 %v614, %v719
    %v721 = vpop.f32.mrb[0].mxu0
    %v722 = vpop.f32.mrb[0].mxu0
    %v723 = vadd.f32 %v619, %v722
    %v724 = vpop.f32.mrb[0].mxu0
    %725 = vdwg.mxu0
    %v726 = vmax.f32 %v696, 0.0
    %v727 = vmax.f32 %v699, 0.0
    %v728 = vmax.f32 %v704, 0.0
    %v729 = vmax.f32 %v707, 0.0
    %v730 = vmax.f32 %v712, 0.0
    %v731 = vmax.f32 %v715, 0.0
    %v732 = vmax.f32 %v720, 0.0
    %v733 = vmax.f32 %v723, 0.0
    %v734 = vpack.c.bf16 %v727, %v726
    %v735 = vpack.c.bf16 %v729, %v728
    %v736 = vpack.c.bf16 %v731, %v730
    %v737 = vpack.c.bf16 %v733, %v732
    %v738 = vld [vmem:[%s5] sm:$0xf]
    %v739 = vld [vmem:[%s5 + $0x4] sm:$0xf]
    %v740 = vld [vmem:[%s6] sm:$0xff]
    %v741 = vld [vmem:[%s6 + $0x8] sm:$0xff]
    %743 = vset.pattern.permute.xlu0 0
    %744 = vperm.xlu0 %743, %v740
    %v745 = vpop.permute.xlu0 %744
    %748 = vset.pattern.permute.xlu0 0
    %749 = vperm.xlu0 %748, %v741
    %v750 = vpop.permute.xlu0 %749
    %v754 = vunpack.c.l.b16 %v738
    %v755 = vunpack.c.l.b16 %v739
    %v756 = vpack.c.b16 %v755, %v754
    %vm757 = vcmask 523264
    %v759 = vsel %vm757, %v756, 0
    %761 = vmatprep.subr.bf16.mxu0 0
    %762 = vmatpush1.bf16.msra.mxu0 %v734
    %763 = vmatprep.subr.bf16.mxu0 0
    %764 = vmatpush1.bf16.msra.mxu0 %v735
    %765 = vmatprep.subr.bf16.mxu0 0
    %766 = vmatpush1.bf16.msra.mxu0 %v736
    %767 = vmatprep.subr.bf16.mxu0 0
    %768 = vmatpush1.bf16.msra.mxu0 %v737
    %769 = vmatprep.subr.bf16.mxu0 0
    %770 = vmatpush1.bf16.msra.mxu0 0
    %771 = vmatprep.subr.bf16.mxu0 0
    %772 = vmatpush1.bf16.msra.mxu0 0
    %773 = vmatprep.subr.bf16.mxu0 0
    %774 = vmatpush1.bf16.msra.mxu0 0
    %775 = vmatprep.subr.bf16.mxu0 0
    %776 = vmatpush1.bf16.msra.mxu0 0
    %777 = vmatprep.subr.bf16.mxu0 0
    %778 = vmatpush1.bf16.msra.mxu0 0
    %779 = vmatprep.subr.bf16.mxu0 0
    %780 = vmatpush1.bf16.msra.mxu0 0
    %781 = vmatprep.subr.bf16.mxu0 0
    %782 = vmatpush1.bf16.msra.mxu0 0
    %783 = vmatprep.subr.bf16.mxu0 0
    %784 = vmatpush1.bf16.msra.mxu0 0
    %785 = vmatprep.subr.bf16.mxu0 0
    %786 = vmatpush1.bf16.msra.mxu0 0
    %787 = vmatprep.subr.bf16.mxu0 0
    %788 = vmatpush1.bf16.msra.mxu0 0
    %789 = vmatprep.subr.bf16.mxu0 0
    %790 = vmatpush1.bf16.msra.mxu0 0
    %791 = vmatprep.subr.bf16.mxu0 0
    %792 = vmatpush1.bf16.msra.mxu0 0
    %793 = vmatprep.mubr.bf16.mxu0 0
    %794 = vmatmul.mubr.bf16.gmra.mrb[0].mxu0 %v759
    %v795 = vpop.f32.mrb[0].mxu0
    %v796 = vadd.f32 %v745, %v795
    %v797 = vpop.f32.mrb[0].mxu0
    %v798 = vpop.f32.mrb[0].mxu0
    %v799 = vadd.f32 %v750, %v798
    %v800 = vpop.f32.mrb[0].mxu0
    %801 = vdwg.mxu0
    %v802 = vmax.f32 %v796, 0.0
    %v803 = vmax.f32 %v799, 0.0
    %v804 = vpack.c.bf16 %v803, %v802
    %v805 = vld [vmem:[%s7] sm:$0x3]
    %v806 = vld [vmem:[%s8] sm:$0x7]
    %808 = vset.pattern.permute.xlu0 0
    %809 = vperm.xlu0 %808, %v806
    %v810 = vpop.permute.xlu0 %809
    %vm812 = vcmask 130048
    %v814 = vsel %vm812, %v805, 0
    %816 = vmatprep.subr.bf16.mxu0 0
    %817 = vmatpush1.bf16.msra.mxu0 %v804
    %818 = vmatprep.subr.bf16.mxu0 0
    %819 = vmatpush1.bf16.msra.mxu0 0
    %820 = vmatprep.subr.bf16.mxu0 0
    %821 = vmatpush1.bf16.msra.mxu0 0
    %822 = vmatprep.subr.bf16.mxu0 0
    %823 = vmatpush1.bf16.msra.mxu0 0
    %824 = vmatprep.subr.bf16.mxu0 0
    %825 = vmatpush1.bf16.msra.mxu0 0
    %826 = vmatprep.subr.bf16.mxu0 0
    %827 = vmatpush1.bf16.msra.mxu0 0
    %828 = vmatprep.subr.bf16.mxu0 0
    %829 = vmatpush1.bf16.msra.mxu0 0
    %830 = vmatprep.subr.bf16.mxu0 0
    %831 = vmatpush1.bf16.msra.mxu0 0
    %832 = vmatprep.subr.bf16.mxu0 0
    %833 = vmatpush1.bf16.msra.mxu0 0
    %834 = vmatprep.subr.bf16.mxu0 0
    %835 = vmatpush1.bf16.msra.mxu0 0
    %836 = vmatprep.subr.bf16.mxu0 0
    %837 = vmatpush1.bf16.msra.mxu0 0
    %838 = vmatprep.subr.bf16.mxu0 0
    %839 = vmatpush1.bf16.msra.mxu0 0
    %840 = vmatprep.subr.bf16.mxu0 0
    %841 = vmatpush1.bf16.msra.mxu0 0
    %842 = vmatprep.subr.bf16.mxu0 0
    %843 = vmatpush1.bf16.msra.mxu0 0
    %844 = vmatprep.subr.bf16.mxu0 0
    %845 = vmatpush1.bf16.msra.mxu0 0
    %846 = vmatprep.subr.bf16.mxu0 0
    %847 = vmatpush1.bf16.msra.mxu0 0
    %848 = vmatprep.mubr.bf16.mxu0 0
    %849 = vmatmul.mubr.bf16.gmra.mrb[0].mxu0 %v814
    %v850 = vpop.f32.mrb[0].mxu0
    %v851 = vadd.f32 %v810, %v850
    %v852 = vpop.f32.mrb[0].mxu0
    %v853 = vpop.f32.mrb[0].mxu0
    %v854 = vpop.f32.mrb[0].mxu0
    %855 = vdwg.mxu0
    %vm856 = vcmask 59392
    %v857 = vsel %vm856, %v851, -inf
    %v858 = vrot.slane %v857, 4
    %v859 = vmax.f32 %v857, %v858
    %v860 = vrot.slane %v859, 2
    %v861 = vmax.f32 %v859, %v860
    %v862 = vrot.slane %v861, 1
    %v863 = vmax.f32 %v861, %v862
    %v864 = vsub.f32 %v851, %v863
    %v865 = vmul.f32 %v864, 1.442695
    %v866 = vpow.pop %v865
    %v867 = vsel %vm856, %v866, 0.0
    %v868 = vrot.slane %v867, 4
    %v869 = vadd.f32 %v867, %v868
    %v870 = vrot.slane %v869, 2
    %v871 = vadd.f32 %v869, %v870
    %v872 = vrot.slane %v871, 1
    %v873 = vadd.f32 %v871, %v872
    %v874 = vrcp.pop %v873
    %v875 = vmul.f32 %v866, %v874
    %876 = vst.msk [vmem:[#allocation2] sm:$0x7] %vm856, %v875
    // Predicated region
    $region38: #{tpu_custom_call.1} parent=1 // pred_check
      _
    $region39: #{tpu_custom_call.1} parent=1 // pred_check_branch
      %878 = sbr.rel (0) target = $region41
    $region40: #{tpu_custom_call.1} parent=1 // pred_region
      %s880 = ssub.s32 64, 64
      %881 = vsyncadd [#allocation3], %s880
      %s883 = sshll.u32 [#allocation2], 4
      %s884 = int_to_ptr.vmem [resolvable:$true] %s883
      %886 = dma.vmem_to_hbm [thread:$0]  %s884, 64, %s9, [#allocation3]
    $region41: #{tpu_custom_call.1} parent=1 // pred_fallthru
      _
    // Predicated region
    $region42: #{tpu_custom_call.1} parent=1 // pred_check
      _
    $region43: #{tpu_custom_call.1} parent=1 // pred_check_branch
      %888 = sbr.rel (0) target = $region45
    $region44: #{tpu_custom_call.1} parent=1 // pred_region
      %889 = dma.done [#allocation3], 64
    $region45: #{tpu_custom_call.1} parent=1 // pred_fallthru
      _
    %890 = vsyncpa [#allocation3], 1

</llo_original>
